<compile_context>
chip_gen: v5e
topology: v5e:2x2
jax: 0.10.0
libtpu: 0.0.40
codegen_flags: <defaults>
</compile_context>

<pallas_src>
import jax
import jax.numpy as jnp
from jax.experimental import pallas as pl
from jax.experimental.pallas import tpu as pltpu


def _round_up(x: int, m: int) -> int:
    return ((x + m - 1) // m) * m


def _mm_kernel_f32(lhs_ref, rhs_ref, out_ref):
    # Output block is resident across the K grid axis (its index_map ignores
    # k), so accumulate directly into it — no extra f32 scratch needed.
    @pl.when(pl.program_id(2) == 0)
    def _():
        out_ref[...] = jnp.zeros_like(out_ref)

    out_ref[...] += jnp.dot(
        lhs_ref[...], rhs_ref[...], preferred_element_type=jnp.float32
    )


def _mm_kernel_acc(lhs_ref, rhs_ref, out_ref, acc_ref):
    # Low-precision output path: accumulate in f32 VMEM scratch, cast once.
    @pl.when(pl.program_id(2) == 0)
    def _():
        acc_ref[...] = jnp.zeros_like(acc_ref)

    acc_ref[...] += jnp.dot(
        lhs_ref[...], rhs_ref[...], preferred_element_type=jnp.float32
    )

    @pl.when(pl.program_id(2) == pl.num_programs(2) - 1)
    def _():
        out_ref[...] = acc_ref[...].astype(out_ref.dtype)


def _vmem_capacity_bytes() -> int:
    # Chip-aware VMEM capacity (128 MiB on v5e/v6e, 64 MiB per TC on v7x).
    try:
        info = pltpu.get_tpu_info()
        cap = getattr(info, "vmem_capacity_bytes", None)
        if cap:
            return int(cap)
    except Exception:
        pass
    return 64 * 1024 * 1024  # conservative fallback (v7x per-TC physical VMEM)


def _pick_tiles(M, N, K, lhs_bytes, rhs_bytes, out_bytes, use_acc, vmem_budget):
    in_bytes = max(lhs_bytes, rhs_bytes)
    tk_target = 2048 if in_bytes <= 2 else 1024  # bf16 inputs -> deeper K tiles
    tm = min(512, _round_up(M, 8))      # sublane dim: multiple of 8
    tn = min(512, _round_up(N, 128))    # lane dim: multiple of 128
    tk = min(tk_target, _round_up(K, 128))

    def footprint(tm_, tn_, tk_):
        # double-buffered inputs + double-buffered output + optional f32 acc
        return (2 * tm_ * tk_ * lhs_bytes
                + 2 * tk_ * tn_ * rhs_bytes
                + 2 * tm_ * tn_ * out_bytes
                + (tm_ * tn_ * 4 if use_acc else 0))

    # Shrink (K first, then N, then M) until the pipeline fits the budget,
    # only halving values that stay aligned to the (8, 128) tiling rules.
    while footprint(tm, tn, tk) > vmem_budget and tk > 256 and tk % 256 == 0:
        tk //= 2
    while footprint(tm, tn, tk) > vmem_budget and tn > 128 and tn % 256 == 0:
        tn //= 2
    while footprint(tm, tn, tk) > vmem_budget and tm > 128 and tm % 256 == 0:
        tm //= 2
    return tm, tn, tk


def mm(lhs: jax.Array, rhs: jax.Array) -> jax.Array:
    """Pallas equivalent of torch.ops.aten.mm(lhs, rhs)."""
    M, K = lhs.shape
    K2, N = rhs.shape
    assert K == K2, "inner dimensions must match"

    out_dtype = jnp.result_type(lhs.dtype, rhs.dtype)
    use_acc = out_dtype != jnp.float32
    lhs_bytes = jnp.dtype(lhs.dtype).itemsize
    rhs_bytes = jnp.dtype(rhs.dtype).itemsize
    out_bytes = jnp.dtype(out_dtype).itemsize

    vmem_cap = _vmem_capacity_bytes()
    vmem_budget = int(vmem_cap * 0.6)  # headroom for compiler scratch

    tm, tn, tk = _pick_tiles(
        M, N, K, lhs_bytes, rhs_bytes, out_bytes, use_acc, vmem_budget
    )

    Mp, Np, Kp = _round_up(M, tm), _round_up(N, tn), _round_up(K, tk)

    # v7x has 2 TensorCores/chip: if the parallel grid degenerated to a single
    # (i, j) block at full-size tiles, split M (or N) so both cores get work.
    if (Mp // tm) * (Np // tn) == 1:
        if tm >= 512 and tm % 2 == 0:
            tm //= 2
            Mp = _round_up(M, tm)
        elif tn >= 512 and tn % 256 == 0:
            tn //= 2
            Np = _round_up(N, tn)

    # Zero-pad to tile multiples (zeros along K contribute nothing; extra M/N
    # rows/cols are sliced off afterwards) -> handles arbitrary aten.mm shapes.
    lhs_p = lhs if (Mp == M and Kp == K) else jnp.pad(
        lhs, ((0, Mp - M), (0, Kp - K)))
    rhs_p = rhs if (Kp == K and Np == N) else jnp.pad(
        rhs, ((0, Kp - K), (0, Np - N)))

    # VMEM limit sized to the actual double-buffered footprint (+ slack).
    footprint = (2 * tm * tk * lhs_bytes
                 + 2 * tk * tn * rhs_bytes
                 + 2 * tm * tn * out_bytes
                 + (tm * tn * 4 if use_acc else 0))
    vmem_limit = int(min(vmem_cap * 0.9, max(footprint + (4 << 20), 32 << 20)))

    cost = pl.CostEstimate(
        flops=2 * M * N * K,
        bytes_accessed=M * K * lhs_bytes + K * N * rhs_bytes + M * N * out_bytes,
        transcendentals=0,
    )

    kernel = _mm_kernel_acc if use_acc else _mm_kernel_f32
    scratch = [pltpu.VMEM((tm, tn), jnp.float32)] if use_acc else []

    out_p = pl.pallas_call(
        kernel,
        out_shape=jax.ShapeDtypeStruct((Mp, Np), out_dtype),
        grid_spec=pltpu.PrefetchScalarGridSpec(
            num_scalar_prefetch=0,
            grid=(Mp // tm, Np // tn, Kp // tk),
            in_specs=[
                pl.BlockSpec((tm, tk), lambda i, j, k: (i, k)),
                pl.BlockSpec((tk, tn), lambda i, j, k: (k, j)),
            ],
            out_specs=pl.BlockSpec((tm, tn), lambda i, j, k: (i, j)),
            scratch_shapes=scratch,
        ),
        compiler_params=pltpu.CompilerParams(
            dimension_semantics=("parallel", "parallel", "arbitrary"),
            vmem_limit_bytes=vmem_limit,
        ),
        cost_estimate=cost,
    )(lhs_p, rhs_p)

    return out_p if (Mp == M and Np == N) else out_p[:M, :N]


if __name__ == "__main__":
    key = jax.random.PRNGKey(0)
    k1, k2, k3, k4 = jax.random.split(key, 4)

    # Small shapes consistent with torch.mm: (M, K) @ (K, N) -> (M, N)
    M, K, N = 128, 256, 128
    lhs = jax.random.normal(k1, (M, K), dtype=jnp.float32)
    rhs = jax.random.normal(k2, (K, N), dtype=jnp.float32)
    out = mm(lhs, rhs)
    jax.block_until_ready(out)
    ref = lhs @ rhs
    assert out.shape == (M, N)
    assert jnp.allclose(out, ref, atol=1e-3, rtol=1e-3)

    # Ragged shapes exercise the padding path (general aten.mm shapes).
    M2, K2, N2 = 100, 200, 96
    lhs2 = jax.random.normal(k3, (M2, K2), dtype=jnp.float32)
    rhs2 = jax.random.normal(k4, (K2, N2), dtype=jnp.float32)
    out2 = mm(lhs2, rhs2)
    jax.block_until_ready(out2)
    ref2 = lhs2 @ rhs2
    assert out2.shape == (M2, N2)
    assert jnp.allclose(out2, ref2, atol=1e-3, rtol=1e-3)

    print("KERNEL_OK")
</pallas_src>

<mosaic_0001>
module attributes {stable_mosaic.version = 11 : i64} {
  func.func @_mm_kernel_f32(%arg0: i32, %arg1: i32, %arg2: i32, %arg3: memref<128x256xf32, #tpu.memory_space<vmem>>, %arg4: memref<256x128xf32, #tpu.memory_space<vmem>>, %arg5: memref<128x128xf32, #tpu.memory_space<vmem>>) attributes {dimension_semantics = [#tpu.dimension_semantics<parallel>, #tpu.dimension_semantics<parallel>, #tpu.dimension_semantics<arbitrary>], iteration_bounds = array<i64: 1, 1, 1>, scalar_prefetch = 0 : i64, scratch_operands = 0 : i64, tpu.core_type = #tpu.core_type<tc>, window_params = [{transform_indices = @transform_0, window_bounds = array<i64: 128, 256>}, {transform_indices = @transform_1, window_bounds = array<i64: 256, 128>}, {transform_indices = @transform_2, window_bounds = array<i64: 128, 128>}]} {
    %c0_i32 = arith.constant 0 : i32
    %0 = arith.cmpi eq, %arg2, %c0_i32 : i32
    %1 = arith.extui %0 : i1 to i32
    %c0_i32_0 = arith.constant 0 : i32
    %2 = arith.cmpi ne, %1, %c0_i32_0 : i32
    scf.if %2 {
      %cst_8 = arith.constant 0.000000e+00 : f32
      %9 = vector.broadcast %cst_8 : f32 to vector<128x128xf32>
      %c0_9 = arith.constant 0 : index
      %c0_10 = arith.constant 0 : index
      %10 = vector.load %arg5[%c0_9, %c0_10] : memref<128x128xf32, #tpu.memory_space<vmem>>, vector<128x128xf32>
      tpu.vector_store %arg5[%c0_9, %c0_10], %9 {strides = array<i32>} : memref<128x128xf32, #tpu.memory_space<vmem>>, vector<128x128xf32>,
    } else {
    }
    %c0 = arith.constant 0 : index
    %c0_1 = arith.constant 0 : index
    %3 = vector.load %arg5[%c0, %c0_1] : memref<128x128xf32, #tpu.memory_space<vmem>>, vector<128x128xf32>
    %c0_2 = arith.constant 0 : index
    %c0_3 = arith.constant 0 : index
    %4 = vector.load %arg3[%c0_2, %c0_3] : memref<128x256xf32, #tpu.memory_space<vmem>>, vector<128x256xf32>
    %c0_4 = arith.constant 0 : index
    %c0_5 = arith.constant 0 : index
    %5 = vector.load %arg4[%c0_4, %c0_5] : memref<256x128xf32, #tpu.memory_space<vmem>>, vector<256x128xf32>
    %cst = arith.constant dense<0.000000e+00> : vector<128x128xf32>
    %6 = tpu.matmul %4, %5, %cst {dimension_numbers = #tpu.dot_dimension_numbers<[1], [0], [0], [1], [0, 0, 1, 1], [], []>} : vector<128x256xf32>, vector<256x128xf32>, vector<128x128xf32> -> vector<128x128xf32>
    %7 = arith.addf %3, %6 : vector<128x128xf32>
    %c0_6 = arith.constant 0 : index
    %c0_7 = arith.constant 0 : index
    %8 = vector.load %arg5[%c0_6, %c0_7] : memref<128x128xf32, #tpu.memory_space<vmem>>, vector<128x128xf32>
    tpu.vector_store %arg5[%c0_6, %c0_7], %7 {strides = array<i32>} : memref<128x128xf32, #tpu.memory_space<vmem>>, vector<128x128xf32>,
    return
  }
  func.func @transform_0(%arg0: i32, %arg1: i32, %arg2: i32) -> (i32, i32) {
    %c0_i32 = arith.constant 0 : i32
    return %arg0, %arg2 : i32, i32
  }
  func.func @transform_1(%arg0: i32, %arg1: i32, %arg2: i32) -> (i32, i32) {
    %c0_i32 = arith.constant 0 : i32
    return %arg2, %arg1 : i32, i32
  }
  func.func @transform_2(%arg0: i32, %arg1: i32, %arg2: i32) -> (i32, i32) {
    %c0_i32 = arith.constant 0 : i32
    return %arg0, %arg1 : i32, i32
  }
}

</mosaic_0001>

<llo_original>
// kernel: tpu_custom_call.1
$region0: #{tpu_custom_call.1}
  #allocation0 [shape = 'u32[]', space=smem, size = 0x4, offset = 0x4, fixed_abs, tag = 'smem constant byte address 0x4 - core index']
  #allocation1 [shape = 'u32[72,128]{1,0:T(1,128)}', space=vmem, size = 0x9000, scoped, tag = 'internal scratch']
  %s0 = inlined_call_operand.hbm [shape: f32[128,256], index: 0, kind: input, shape index: {}]
  %s1 = inlined_call_operand.hbm [shape: f32[256,128], index: 1, kind: input, shape index: {}]
  %s2 = inlined_call_operand.hbm [shape: f32[128,128], index: 2, kind: output, shape index: {}]
  %s3 = sld [smem:[#allocation0]]
  $region30: #{tpu_custom_call.1} parent=0
    _
  %s5 = ssub.s32 1, %s3
  %s6 = scalar_select 0, %s5, %s3
  $region1: #{tpu_custom_call.1} parent=0
    #allocation2 [shape = 'u8[131072]{0}', space=vmem, size = 0x20000, scoped, tag = 'input window, operand 0, single buffered']
    #allocation3 [shape = 's32[1]{0}', space=sflag, size = 0x4, scoped, tag = 'scoped memory for tpu_custom_call.1']
    #allocation4 [shape = 's32[1]{0}', space=sflag, size = 0x4, scoped, tag = 'scoped memory for tpu_custom_call.1']
    #allocation5 [shape = 'u8[131072]{0}', space=vmem, size = 0x20000, scoped, tag = 'input window, operand 1, single buffered']
    #allocation6 [shape = 's32[1]{0}', space=sflag, size = 0x4, scoped, tag = 'scoped memory for tpu_custom_call.1']
    #allocation7 [shape = 'u8[65536]{0}', space=vmem, size = 0x10000, scoped, tag = 'output window, operand 0, single buffered']
    %7 = vsyncpa [#allocation3], 0
    %8 = vsyncpa [#allocation6], 0
    %9 = vsyncpa [#allocation4], 0
    // Predicated region
    $region2: #{tpu_custom_call.1} parent=1 // pred_check
      _
    $region3: #{tpu_custom_call.1} parent=1 // pred_check_branch
      %11 = sbr.rel (0) target = $region5
    $region4: #{tpu_custom_call.1} parent=1 // pred_region
      %13 = vsyncadd [#allocation3], 0
      %s14 = sshll.u32 %s0, 4
      %s15 = int_to_ptr.hbm [resolvable:$true] %s14
      %s16 = sshll.u32 [#allocation2], 4
      %s17 = int_to_ptr.vmem [resolvable:$true] %s16
      %22 = dma.hbm_to_vmem [thread:$0]  %s15, 4096, %s17, [#allocation3], 256, 256, 16
    $region5: #{tpu_custom_call.1} parent=1 // pred_fallthru
      _
    // Predicated region
    $region6: #{tpu_custom_call.1} parent=1 // pred_check
      _
    $region7: #{tpu_custom_call.1} parent=1 // pred_check_branch
      %24 = sbr.rel (0) target = $region9
    $region8: #{tpu_custom_call.1} parent=1 // pred_region
      %26 = vsyncadd [#allocation6], 0
      %s27 = sshll.u32 %s1, 4
      %s28 = int_to_ptr.hbm [resolvable:$true] %s27
      %s29 = sshll.u32 [#allocation5], 4
      %s30 = int_to_ptr.vmem [resolvable:$true] %s29
      %35 = dma.hbm_to_vmem [thread:$0]  %s28, 4096, %s30, [#allocation6], 128, 128, 8
    $region9: #{tpu_custom_call.1} parent=1 // pred_fallthru
      _
    // Predicated region
    $region10: #{tpu_custom_call.1} parent=1 // pred_check
      _
    $region11: #{tpu_custom_call.1} parent=1 // pred_check_branch
      %37 = sbr.rel (0) target = $region13
    $region12: #{tpu_custom_call.1} parent=1 // pred_region
      %39 = dma.done [#allocation3], 4096
    $region13: #{tpu_custom_call.1} parent=1 // pred_fallthru
      _
    // Predicated region
    $region14: #{tpu_custom_call.1} parent=1 // pred_check
      _
    $region15: #{tpu_custom_call.1} parent=1 // pred_check_branch
      %41 = sbr.rel (0) target = $region17
    $region16: #{tpu_custom_call.1} parent=1 // pred_region
      %43 = dma.done [#allocation6], 4096
    $region17: #{tpu_custom_call.1} parent=1 // pred_fallthru
      _
    %p44 = scmp.eq.s32.totalorder 0, 0
    // Predicated region
    $region18: #{tpu_custom_call.1} parent=1 // pred_check
      %p45 = pneg %p44
    $region19: #{tpu_custom_call.1} parent=1 // pred_check_branch
      %47 = sbr.rel (%p45) target = $region21
    $region20: #{tpu_custom_call.1} parent=1 // pred_region
      %48 = vst [vmem:[#allocation7] sm:$0xff] 0.0
      %49 = vst [vmem:[#allocation7 + $0x8] sm:$0xff] 0.0
      %50 = vst [vmem:[#allocation7 + $0x10] sm:$0xff] 0.0
      %51 = vst [vmem:[#allocation7 + $0x18] sm:$0xff] 0.0
      %52 = vst [vmem:[#allocation7 + $0x20] sm:$0xff] 0.0
      %53 = vst [vmem:[#allocation7 + $0x28] sm:$0xff] 0.0
      %54 = vst [vmem:[#allocation7 + $0x30] sm:$0xff] 0.0
      %55 = vst [vmem:[#allocation7 + $0x38] sm:$0xff] 0.0
      %56 = vst [vmem:[#allocation7 + $0x40] sm:$0xff] 0.0
      %57 = vst [vmem:[#allocation7 + $0x48] sm:$0xff] 0.0
      %58 = vst [vmem:[#allocation7 + $0x50] sm:$0xff] 0.0
      %59 = vst [vmem:[#allocation7 + $0x58] sm:$0xff] 0.0
      %60 = vst [vmem:[#allocation7 + $0x60] sm:$0xff] 0.0
      %61 = vst [vmem:[#allocation7 + $0x68] sm:$0xff] 0.0
      %62 = vst [vmem:[#allocation7 + $0x70] sm:$0xff] 0.0
      %63 = vst [vmem:[#allocation7 + $0x78] sm:$0xff] 0.0
    $region21: #{tpu_custom_call.1} parent=1 // pred_fallthru
      _
    %v64 = vld [vmem:[#allocation7] sm:$0xff]
    %v65 = vld [vmem:[#allocation7 + $0x8] sm:$0xff]
    %v66 = vld [vmem:[#allocation7 + $0x10] sm:$0xff]
    %v67 = vld [vmem:[#allocation7 + $0x18] sm:$0xff]
    %v68 = vld [vmem:[#allocation7 + $0x20] sm:$0xff]
    %v69 = vld [vmem:[#allocation7 + $0x28] sm:$0xff]
    %v70 = vld [vmem:[#allocation7 + $0x30] sm:$0xff]
    %v71 = vld [vmem:[#allocation7 + $0x38] sm:$0xff]
    %v72 = vld [vmem:[#allocation7 + $0x40] sm:$0xff]
    %v73 = vld [vmem:[#allocation7 + $0x48] sm:$0xff]
    %v74 = vld [vmem:[#allocation7 + $0x50] sm:$0xff]
    %v75 = vld [vmem:[#allocation7 + $0x58] sm:$0xff]
    %v76 = vld [vmem:[#allocation7 + $0x60] sm:$0xff]
    %v77 = vld [vmem:[#allocation7 + $0x68] sm:$0xff]
    %v78 = vld [vmem:[#allocation7 + $0x70] sm:$0xff]
    %v79 = vld [vmem:[#allocation7 + $0x78] sm:$0xff]
    %v80 = vld [vmem:[#allocation2] sm:$0xff]
    %v81 = vld [vmem:[#allocation2 + $0x8] sm:$0xff]
    %v82 = vld [vmem:[#allocation2 + $0x10] sm:$0xff]
    %v83 = vld [vmem:[#allocation2 + $0x18] sm:$0xff]
    %v84 = vld [vmem:[#allocation2 + $0x20] sm:$0xff]
    %v85 = vld [vmem:[#allocation2 + $0x28] sm:$0xff]
    %v86 = vld [vmem:[#allocation2 + $0x30] sm:$0xff]
    %v87 = vld [vmem:[#allocation2 + $0x38] sm:$0xff]
    %v88 = vld [vmem:[#allocation2 + $0x40] sm:$0xff]
    %v89 = vld [vmem:[#allocation2 + $0x48] sm:$0xff]
    %v90 = vld [vmem:[#allocation2 + $0x50] sm:$0xff]
    %v91 = vld [vmem:[#allocation2 + $0x58] sm:$0xff]
    %v92 = vld [vmem:[#allocation2 + $0x60] sm:$0xff]
    %v93 = vld [vmem:[#allocation2 + $0x68] sm:$0xff]
    %v94 = vld [vmem:[#allocation2 + $0x70] sm:$0xff]
    %v95 = vld [vmem:[#allocation2 + $0x78] sm:$0xff]
    %v96 = vld [vmem:[#allocation2 + $0x80] sm:$0xff]
    %v97 = vld [vmem:[#allocation2 + $0x88] sm:$0xff]
    %v98 = vld [vmem:[#allocation2 + $0x90] sm:$0xff]
    %v99 = vld [vmem:[#allocation2 + $0x98] sm:$0xff]
    %v100 = vld [vmem:[#allocation2 + $0xa0] sm:$0xff]
    %v101 = vld [vmem:[#allocation2 + $0xa8] sm:$0xff]
    %v102 = vld [vmem:[#allocation2 + $0xb0] sm:$0xff]
    %v103 = vld [vmem:[#allocation2 + $0xb8] sm:$0xff]
    %v104 = vld [vmem:[#allocation2 + $0xc0] sm:$0xff]
    %v105 = vld [vmem:[#allocation2 + $0xc8] sm:$0xff]
    %v106 = vld [vmem:[#allocation2 + $0xd0] sm:$0xff]
    %v107 = vld [vmem:[#allocation2 + $0xd8] sm:$0xff]
    %v108 = vld [vmem:[#allocation2 + $0xe0] sm:$0xff]
    %v109 = vld [vmem:[#allocation2 + $0xe8] sm:$0xff]
    %v110 = vld [vmem:[#allocation2 + $0xf0] sm:$0xff]
    %v111 = vld [vmem:[#allocation2 + $0xf8] sm:$0xff]
    %v112 = vld [vmem:[#allocation5] sm:$0xff]
    %v113 = vld [vmem:[#allocation5 + $0x8] sm:$0xff]
    %v114 = vld [vmem:[#allocation5 + $0x10] sm:$0xff]
    %v115 = vld [vmem:[#allocation5 + $0x18] sm:$0xff]
    %v116 = vld [vmem:[#allocation5 + $0x20] sm:$0xff]
    %v117 = vld [vmem:[#allocation5 + $0x28] sm:$0xff]
    %v118 = vld [vmem:[#allocation5 + $0x30] sm:$0xff]
    %v119 = vld [vmem:[#allocation5 + $0x38] sm:$0xff]
    %v120 = vld [vmem:[#allocation5 + $0x40] sm:$0xff]
    %v121 = vld [vmem:[#allocation5 + $0x48] sm:$0xff]
    %v122 = vld [vmem:[#allocation5 + $0x50] sm:$0xff]
    %v123 = vld [vmem:[#allocation5 + $0x58] sm:$0xff]
    %v124 = vld [vmem:[#allocation5 + $0x60] sm:$0xff]
    %v125 = vld [vmem:[#allocation5 + $0x68] sm:$0xff]
    %v126 = vld [vmem:[#allocation5 + $0x70] sm:$0xff]
    %v127 = vld [vmem:[#allocation5 + $0x78] sm:$0xff]
    %v128 = vld [vmem:[#allocation5 + $0x80] sm:$0xff]
    %v129 = vld [vmem:[#allocation5 + $0x88] sm:$0xff]
    %v130 = vld [vmem:[#allocation5 + $0x90] sm:$0xff]
    %v131 = vld [vmem:[#allocation5 + $0x98] sm:$0xff]
    %v132 = vld [vmem:[#allocation5 + $0xa0] sm:$0xff]
    %v133 = vld [vmem:[#allocation5 + $0xa8] sm:$0xff]
    %v134 = vld [vmem:[#allocation5 + $0xb0] sm:$0xff]
    %v135 = vld [vmem:[#allocation5 + $0xb8] sm:$0xff]
    %v136 = vld [vmem:[#allocation5 + $0xc0] sm:$0xff]
    %v137 = vld [vmem:[#allocation5 + $0xc8] sm:$0xff]
    %v138 = vld [vmem:[#allocation5 + $0xd0] sm:$0xff]
    %v139 = vld [vmem:[#allocation5 + $0xd8] sm:$0xff]
    %v140 = vld [vmem:[#allocation5 + $0xe0] sm:$0xff]
    %v141 = vld [vmem:[#allocation5 + $0xe8] sm:$0xff]
    %v142 = vld [vmem:[#allocation5 + $0xf0] sm:$0xff]
    %v143 = vld [vmem:[#allocation5 + $0xf8] sm:$0xff]
    %144 = vmatpush.msra.mxu0 %v127
    %145 = vmatpush.msra.mxu0 %v126
    %146 = vmatpush.msra.mxu0 %v125
    %147 = vmatpush.msra.mxu0 %v124
    %148 = vmatpush.msra.mxu0 %v123
    %149 = vmatpush.msra.mxu0 %v122
    %150 = vmatpush.msra.mxu0 %v121
    %151 = vmatpush.msra.mxu0 %v120
    %152 = vmatpush.msra.mxu0 %v119
    %153 = vmatpush.msra.mxu0 %v118
    %154 = vmatpush.msra.mxu0 %v117
    %155 = vmatpush.msra.mxu0 %v116
    %156 = vmatpush.msra.mxu0 %v115
    %157 = vmatpush.msra.mxu0 %v114
    %158 = vmatpush.msra.mxu0 %v113
    %159 = vmatpush.msra.mxu0 %v112
    %160 = vmatmul.f32.gmra.mxu0 %v80
    %v161 = vpop.f32.mrf.mxu0
    %v162 = vadd.f32 0.0, %v161
    %163 = vmatmul.f32.gmra.mxu0 %v82
    %v164 = vpop.f32.mrf.mxu0
    %v165 = vadd.f32 0.0, %v164
    %166 = vmatmul.f32.gmra.mxu0 %v84
    %v167 = vpop.f32.mrf.mxu0
    %v168 = vadd.f32 0.0, %v167
    %169 = vmatmul.f32.gmra.mxu0 %v86
    %v170 = vpop.f32.mrf.mxu0
    %v171 = vadd.f32 0.0, %v170
    %172 = vmatmul.f32.gmra.mxu0 %v88
    %v173 = vpop.f32.mrf.mxu0
    %v174 = vadd.f32 0.0, %v173
    %175 = vmatmul.f32.gmra.mxu0 %v90
    %v176 = vpop.f32.mrf.mxu0
    %v177 = vadd.f32 0.0, %v176
    %178 = vmatmul.f32.gmra.mxu0 %v92
    %v179 = vpop.f32.mrf.mxu0
    %v180 = vadd.f32 0.0, %v179
    %181 = vmatmul.f32.gmra.mxu0 %v94
    %v182 = vpop.f32.mrf.mxu0
    %v183 = vadd.f32 0.0, %v182
    %184 = vmatmul.f32.gmra.mxu0 %v96
    %v185 = vpop.f32.mrf.mxu0
    %v186 = vadd.f32 0.0, %v185
    %187 = vmatmul.f32.gmra.mxu0 %v98
    %v188 = vpop.f32.mrf.mxu0
    %v189 = vadd.f32 0.0, %v188
    %190 = vmatmul.f32.gmra.mxu0 %v100
    %v191 = vpop.f32.mrf.mxu0
    %v192 = vadd.f32 0.0, %v191
    %193 = vmatmul.f32.gmra.mxu0 %v102
    %v194 = vpop.f32.mrf.mxu0
    %v195 = vadd.f32 0.0, %v194
    %196 = vmatmul.f32.gmra.mxu0 %v104
    %v197 = vpop.f32.mrf.mxu0
    %v198 = vadd.f32 0.0, %v197
    %199 = vmatmul.f32.gmra.mxu0 %v106
    %v200 = vpop.f32.mrf.mxu0
    %v201 = vadd.f32 0.0, %v200
    %202 = vmatmul.f32.gmra.mxu0 %v108
    %v203 = vpop.f32.mrf.mxu0
    %v204 = vadd.f32 0.0, %v203
    %205 = vmatmul.f32.gmra.mxu0 %v110
    %v206 = vpop.f32.mrf.mxu0
    %v207 = vadd.f32 0.0, %v206
    %208 = vdwg.mxu0
    %209 = vmatpush.msra.mxu0 %v143
    %210 = vmatpush.msra.mxu0 %v142
    %211 = vmatpush.msra.mxu0 %v141
    %212 = vmatpush.msra.mxu0 %v140
    %213 = vmatpush.msra.mxu0 %v139
    %214 = vmatpush.msra.mxu0 %v138
    %215 = vmatpush.msra.mxu0 %v137
    %216 = vmatpush.msra.mxu0 %v136
    %217 = vmatpush.msra.mxu0 %v135
    %218 = vmatpush.msra.mxu0 %v134
    %219 = vmatpush.msra.mxu0 %v133
    %220 = vmatpush.msra.mxu0 %v132
    %221 = vmatpush.msra.mxu0 %v131
    %222 = vmatpush.msra.mxu0 %v130
    %223 = vmatpush.msra.mxu0 %v129
    %224 = vmatpush.msra.mxu0 %v128
    %225 = vmatmul.f32.gmra.mxu0 %v81
    %v226 = vpop.f32.mrf.mxu0
    %v227 = vadd.f32 %v162, %v226
    %228 = vmatmul.f32.gmra.mxu0 %v83
    %v229 = vpop.f32.mrf.mxu0
    %v230 = vadd.f32 %v165, %v229
    %231 = vmatmul.f32.gmra.mxu0 %v85
    %v232 = vpop.f32.mrf.mxu0
    %v233 = vadd.f32 %v168, %v232
    %234 = vmatmul.f32.gmra.mxu0 %v87
    %v235 = vpop.f32.mrf.mxu0
    %v236 = vadd.f32 %v171, %v235
    %237 = vmatmul.f32.gmra.mxu0 %v89
    %v238 = vpop.f32.mrf.mxu0
    %v239 = vadd.f32 %v174, %v238
    %240 = vmatmul.f32.gmra.mxu0 %v91
    %v241 = vpop.f32.mrf.mxu0
    %v242 = vadd.f32 %v177, %v241
    %243 = vmatmul.f32.gmra.mxu0 %v93
    %v244 = vpop.f32.mrf.mxu0
    %v245 = vadd.f32 %v180, %v244
    %246 = vmatmul.f32.gmra.mxu0 %v95
    %v247 = vpop.f32.mrf.mxu0
    %v248 = vadd.f32 %v183, %v247
    %249 = vmatmul.f32.gmra.mxu0 %v97
    %v250 = vpop.f32.mrf.mxu0
    %v251 = vadd.f32 %v186, %v250
    %252 = vmatmul.f32.gmra.mxu0 %v99
    %v253 = vpop.f32.mrf.mxu0
    %v254 = vadd.f32 %v189, %v253
    %255 = vmatmul.f32.gmra.mxu0 %v101
    %v256 = vpop.f32.mrf.mxu0
    %v257 = vadd.f32 %v192, %v256
    %258 = vmatmul.f32.gmra.mxu0 %v103
    %v259 = vpop.f32.mrf.mxu0
    %v260 = vadd.f32 %v195, %v259
    %261 = vmatmul.f32.gmra.mxu0 %v105
    %v262 = vpop.f32.mrf.mxu0
    %v263 = vadd.f32 %v198, %v262
    %264 = vmatmul.f32.gmra.mxu0 %v107
    %v265 = vpop.f32.mrf.mxu0
    %v266 = vadd.f32 %v201, %v265
    %267 = vmatmul.f32.gmra.mxu0 %v109
    %v268 = vpop.f32.mrf.mxu0
    %v269 = vadd.f32 %v204, %v268
    %270 = vmatmul.f32.gmra.mxu0 %v111
    %v271 = vpop.f32.mrf.mxu0
    %v272 = vadd.f32 %v207, %v271
    %273 = vdwg.mxu0
    %v274 = vadd.f32 %v64, %v227
    %v275 = vadd.f32 %v65, %v230
    %v276 = vadd.f32 %v66, %v233
    %v277 = vadd.f32 %v67, %v236
    %v278 = vadd.f32 %v68, %v239
    %v279 = vadd.f32 %v69, %v242
    %v280 = vadd.f32 %v70, %v245
    %v281 = vadd.f32 %v71, %v248
    %v282 = vadd.f32 %v72, %v251
    %v283 = vadd.f32 %v73, %v254
    %v284 = vadd.f32 %v74, %v257
    %v285 = vadd.f32 %v75, %v260
    %v286 = vadd.f32 %v76, %v263
    %v287 = vadd.f32 %v77, %v266
    %v288 = vadd.f32 %v78, %v269
    %v289 = vadd.f32 %v79, %v272
    %290 = vst [vmem:[#allocation7] sm:$0xff] %v274
    %291 = vst [vmem:[#allocation7 + $0x8] sm:$0xff] %v275
    %292 = vst [vmem:[#allocation7 + $0x10] sm:$0xff] %v276
    %293 = vst [vmem:[#allocation7 + $0x18] sm:$0xff] %v277
    %294 = vst [vmem:[#allocation7 + $0x20] sm:$0xff] %v278
    %295 = vst [vmem:[#allocation7 + $0x28] sm:$0xff] %v279
    %296 = vst [vmem:[#allocation7 + $0x30] sm:$0xff] %v280
    %297 = vst [vmem:[#allocation7 + $0x38] sm:$0xff] %v281
    %298 = vst [vmem:[#allocation7 + $0x40] sm:$0xff] %v282
    %299 = vst [vmem:[#allocation7 + $0x48] sm:$0xff] %v283
    %300 = vst [vmem:[#allocation7 + $0x50] sm:$0xff] %v284
    %301 = vst [vmem:[#allocation7 + $0x58] sm:$0xff] %v285
    %302 = vst [vmem:[#allocation7 + $0x60] sm:$0xff] %v286
    %303 = vst [vmem:[#allocation7 + $0x68] sm:$0xff] %v287
    %304 = vst [vmem:[#allocation7 + $0x70] sm:$0xff] %v288
    %305 = vst [vmem:[#allocation7 + $0x78] sm:$0xff] %v289
    // Predicated region
    $region22: #{tpu_custom_call.1} parent=1 // pred_check
      _
    $region23: #{tpu_custom_call.1} parent=1 // pred_check_branch
      %307 = sbr.rel (0) target = $region25
    $region24: #{tpu_custom_call.1} parent=1 // pred_region
      %309 = vsyncadd [#allocation4], 0
      %s310 = sshll.u32 [#allocation7], 4
      %s311 = int_to_ptr.vmem [resolvable:$true] %s310
      %s312 = sshll.u32 %s2, 4
      %s313 = int_to_ptr.hbm [resolvable:$true] %s312
      %318 = dma.vmem_to_hbm [thread:$0]  %s311, 2048, %s313, [#allocation4], 128, 128, 8
    $region25: #{tpu_custom_call.1} parent=1 // pred_fallthru
      _
    // Predicated region
    $region26: #{tpu_custom_call.1} parent=1 // pred_check
      _
    $region27: #{tpu_custom_call.1} parent=1 // pred_check_branch
      %320 = sbr.rel (0) target = $region29
    $region28: #{tpu_custom_call.1} parent=1 // pred_region
      %322 = dma.done [#allocation4], 2048
    $region29: #{tpu_custom_call.1} parent=1 // pred_fallthru
      _
    %323 = vsyncpa [#allocation3], 1
    %324 = vsyncpa [#allocation6], 1
    %325 = vsyncpa [#allocation4], 1

</llo_original>
